<compile_context>
chip_gen: v6e
topology: v6e:2x2x1
jax: 0.10.0
libtpu: 0.0.40
codegen_flags: <defaults>
</compile_context>

<pallas_src>
from functools import partial

import jax
import jax.numpy as jnp
from jax.experimental import pallas as pl
from jax.experimental.pallas import tpu as pltpu


def downsample_kernel(p_ref, w_ref, b_ref, conv_ref, pool_ref, *, K, I, C3):
    """One batch element per grid step (im2col done in the wrapper).

    p_ref:    (1, Rp, K*K*I)  im2col patches, feature order (kh, kw, i)
    w_ref:    (K*K*I, C3)     conv weights with BN scale folded in
    b_ref:    (1, C3)         folded BN bias
    conv_ref: (1, Rp, C3)     conv -> BN -> ReLU branch
    pool_ref: (1, Rp, I)      3x3 / stride-2 max-pool branch
    """
    p = p_ref[0]                                              # (Rp, KKI)

    # Conv branch: single MXU matmul with a K*K*I-deep contraction,
    # then folded-BN bias + ReLU on the VPU.
    acc = jnp.dot(p, w_ref[...], preferred_element_type=jnp.float32)
    conv_ref[0] = jnp.maximum(acc + b_ref[...], 0.0)

    # Max-pool branch: elementwise max over the 9 taps that are already
    # laid out contiguously in the patch matrix (static lane slices, VPU).
    pool = p[:, 0:I]
    for t in range(1, K * K):
        pool = jnp.maximum(pool, p[:, t * I:(t + 1) * I])
    pool_ref[0] = pool


def downsample_forward(x_nchw, weight_oihw, conv_bias, gamma, beta, rmean, rvar,
                       eps=1e-3):
    N, I, H, W = x_nchw.shape
    C3 = weight_oihw.shape[0]
    K, S = 3, 2
    Ho = (H - K) // S + 1
    Wo = (W - K) // S + 1
    R = Ho * Wo
    Rp = ((R + 7) // 8) * 8            # pad rows to a sublane multiple
    KKI = K * K * I

    # ---- wrapper-side layout plumbing / parameter folding (plain XLA) ----
    x = jnp.transpose(x_nchw, (0, 2, 3, 1)).astype(jnp.float32)       # NHWC

    # im2col: 9 stride-2 taps, feature order (kh, kw, i) with i fastest.
    taps = []
    for kh in range(K):
        for kw in range(K):
            taps.append(x[:, kh:kh + S * (Ho - 1) + 1:S,
                          kw:kw + S * (Wo - 1) + 1:S, :])             # (N,Ho,Wo,I)
    patches = jnp.concatenate(taps, axis=-1).reshape(N, R, KKI)
    patches = jnp.pad(patches, ((0, 0), (0, Rp - R), (0, 0)))         # (N,Rp,KKI)

    # Fold eval-mode BN into the conv weights / bias.
    scale = gamma / jnp.sqrt(rvar + eps)                              # (C3,)
    bias = ((conv_bias - rmean) * scale + beta).reshape(1, C3).astype(jnp.float32)
    w = jnp.transpose(weight_oihw, (2, 3, 1, 0)).astype(jnp.float32)  # (K,K,I,C3)
    w = (w * scale).reshape(KKI, C3).astype(jnp.float32)              # (KKI, C3)

    flops = 2 * N * R * KKI * C3 + N * R * (K * K - 1) * I + 2 * N * R * C3
    bytes_accessed = 4 * (patches.size + w.size + bias.size
                          + N * Rp * C3 + N * Rp * I)
    cost = pl.CostEstimate(flops=flops, transcendentals=0,
                           bytes_accessed=bytes_accessed)

    kern = partial(downsample_kernel, K=K, I=I, C3=C3)

    conv_out, pool_out = pl.pallas_call(
        kern,
        out_shape=(jax.ShapeDtypeStruct((N, Rp, C3), jnp.float32),
                   jax.ShapeDtypeStruct((N, Rp, I), jnp.float32)),
        grid=(N,),
        in_specs=[
            pl.BlockSpec((1, Rp, KKI), lambda n: (n, 0, 0)),
            pl.BlockSpec((KKI, C3), lambda n: (0, 0)),
            pl.BlockSpec((1, C3), lambda n: (0, 0)),
        ],
        out_specs=(
            pl.BlockSpec((1, Rp, C3), lambda n: (n, 0, 0)),
            pl.BlockSpec((1, Rp, I), lambda n: (n, 0, 0)),
        ),
        compiler_params=pltpu.CompilerParams(dimension_semantics=("parallel",)),
        cost_estimate=cost,
    )(patches, w, bias)

    # ---- wrapper-side un-padding / concat / layout back to NCHW ----
    conv = conv_out[:, :R].reshape(N, Ho, Wo, C3)
    pool = pool_out[:, :R].reshape(N, Ho, Wo, I)
    out_nhwc = jnp.concatenate([conv, pool], axis=-1)                 # (N,Ho,Wo,C3+I)
    return jnp.transpose(out_nhwc, (0, 3, 1, 2))                      # NCHW


def reference_forward(x, weight, conv_bias, gamma, beta, rmean, rvar, eps=1e-3):
    """Pure-JAX reference of the PyTorch module (eval-mode BN, eps=0.001)."""
    C3 = weight.shape[0]
    conv = jax.lax.conv_general_dilated(
        x, weight, window_strides=(2, 2), padding='VALID',
        dimension_numbers=('NCHW', 'OIHW', 'NCHW'))
    conv = conv + conv_bias.reshape(1, C3, 1, 1)
    bn = ((conv - rmean.reshape(1, C3, 1, 1))
          / jnp.sqrt(rvar.reshape(1, C3, 1, 1) + eps)
          * gamma.reshape(1, C3, 1, 1) + beta.reshape(1, C3, 1, 1))
    y = jnp.maximum(bn, 0.0)
    z = jax.lax.reduce_window(x, -jnp.inf, jax.lax.max,
                              (1, 1, 3, 3), (1, 1, 2, 2), 'VALID')
    return jnp.concatenate([y, z], axis=1)


if __name__ == "__main__":
    key = jax.random.PRNGKey(0)
    k_x, k_w, k_b, k_g, k_be, k_m, k_v = jax.random.split(key, 7)

    N, I, H, W = 2, 4, 16, 16
    C3 = 8

    x = jax.random.normal(k_x, (N, I, H, W), jnp.float32)
    weight = jax.random.normal(k_w, (C3, I, 3, 3), jnp.float32) * 0.1
    conv_bias = jax.random.normal(k_b, (C3,), jnp.float32) * 0.1
    gamma = 1.0 + 0.1 * jax.random.normal(k_g, (C3,), jnp.float32)
    beta = 0.1 * jax.random.normal(k_be, (C3,), jnp.float32)
    rmean = 0.1 * jax.random.normal(k_m, (C3,), jnp.float32)
    rvar = 1.0 + 0.1 * jax.random.uniform(k_v, (C3,), jnp.float32)

    out = downsample_forward(x, weight, conv_bias, gamma, beta, rmean, rvar)
    out = jax.block_until_ready(out)

    ref = reference_forward(x, weight, conv_bias, gamma, beta, rmean, rvar)
    assert out.shape == (N, C3 + I, (H - 3) // 2 + 1, (W - 3) // 2 + 1), out.shape
    assert jnp.allclose(out, ref, atol=1e-4, rtol=1e-4), \
        f"max abs err {jnp.max(jnp.abs(out - ref))}"

    print("KERNEL_OK")
</pallas_src>

<mosaic_0001>
module attributes {stable_mosaic.version = 11 : i64} {
  func.func @downsample_kernel(%arg0: i32, %arg1: memref<1x56x36xf32, #tpu.memory_space<vmem>>, %arg2: memref<36x8xf32, #tpu.memory_space<vmem>>, %arg3: memref<1x8xf32, #tpu.memory_space<vmem>>, %arg4: memref<1x56x8xf32, #tpu.memory_space<vmem>>, %arg5: memref<1x56x4xf32, #tpu.memory_space<vmem>>) attributes {dimension_semantics = [#tpu.dimension_semantics<parallel>], iteration_bounds = array<i64: 2>, scalar_prefetch = 0 : i64, scratch_operands = 0 : i64, tpu.core_type = #tpu.core_type<tc>, window_params = [{transform_indices = @transform_0, window_bounds = array<i64: 1, 56, 36>}, {pipeline_mode = #tpu.pipeline_mode<synchronous>, transform_indices = @transform_1, window_bounds = array<i64: 36, 8>}, {pipeline_mode = #tpu.pipeline_mode<synchronous>, transform_indices = @transform_2, window_bounds = array<i64: 1, 8>}, {transform_indices = @transform_3, window_bounds = array<i64: 1, 56, 8>}, {transform_indices = @transform_4, window_bounds = array<i64: 1, 56, 4>}]} {
    %c0 = arith.constant 0 : index
    %c0_0 = arith.constant 0 : index
    %c0_1 = arith.constant 0 : index
    %0 = vector.load %arg1[%c0, %c0_0, %c0_1] : memref<1x56x36xf32, #tpu.memory_space<vmem>>, vector<1x56x36xf32>
    %1 = vector.shape_cast %0 : vector<1x56x36xf32> to vector<56x36xf32>
    %c0_2 = arith.constant 0 : index
    %c0_3 = arith.constant 0 : index
    %2 = vector.load %arg2[%c0_2, %c0_3] : memref<36x8xf32, #tpu.memory_space<vmem>>, vector<36x8xf32>
    %cst = arith.constant dense<0.000000e+00> : vector<56x8xf32>
    %3 = tpu.matmul %1, %2, %cst {dimension_numbers = #tpu.dot_dimension_numbers<[1], [0], [0], [1], [0, 0, 1, 1], [], []>} : vector<56x36xf32>, vector<36x8xf32>, vector<56x8xf32> -> vector<56x8xf32>
    %c0_4 = arith.constant 0 : index
    %c0_5 = arith.constant 0 : index
    %4 = vector.load %arg3[%c0_4, %c0_5] : memref<1x8xf32, #tpu.memory_space<vmem>>, vector<1x8xf32>
    %5 = vector.broadcast %4 : vector<1x8xf32> to vector<56x8xf32>
    %6 = arith.addf %3, %5 : vector<56x8xf32>
    %cst_6 = arith.constant 0.000000e+00 : f32
    %7 = vector.broadcast %cst_6 : f32 to vector<56x8xf32>
    %8 = arith.maximumf %6, %7 : vector<56x8xf32>
    %c0_7 = arith.constant 0 : index
    %c0_8 = arith.constant 0 : index
    %c0_9 = arith.constant 0 : index
    %9 = vector.load %arg4[%c0_7, %c0_8, %c0_9] : memref<1x56x8xf32, #tpu.memory_space<vmem>>, vector<1x56x8xf32>
    %10 = vector.shape_cast %9 : vector<1x56x8xf32> to vector<56x8xf32>
    %11 = vector.shape_cast %8 : vector<56x8xf32> to vector<1x56x8xf32>
    tpu.vector_store %arg4[%c0_7, %c0_8, %c0_9], %11 {strides = array<i32>} : memref<1x56x8xf32, #tpu.memory_space<vmem>>, vector<1x56x8xf32>,
    %12 = vector.extract_strided_slice %1 {offsets = [0, 0], sizes = [56, 4], strides = [1, 1]} : vector<56x36xf32> to vector<56x4xf32>
    %13 = vector.extract_strided_slice %1 {offsets = [0, 4], sizes = [56, 4], strides = [1, 1]} : vector<56x36xf32> to vector<56x4xf32>
    %14 = arith.maximumf %12, %13 : vector<56x4xf32>
    %15 = vector.extract_strided_slice %1 {offsets = [0, 8], sizes = [56, 4], strides = [1, 1]} : vector<56x36xf32> to vector<56x4xf32>
    %16 = arith.maximumf %14, %15 : vector<56x4xf32>
    %17 = vector.extract_strided_slice %1 {offsets = [0, 12], sizes = [56, 4], strides = [1, 1]} : vector<56x36xf32> to vector<56x4xf32>
    %18 = arith.maximumf %16, %17 : vector<56x4xf32>
    %19 = vector.extract_strided_slice %1 {offsets = [0, 16], sizes = [56, 4], strides = [1, 1]} : vector<56x36xf32> to vector<56x4xf32>
    %20 = arith.maximumf %18, %19 : vector<56x4xf32>
    %21 = vector.extract_strided_slice %1 {offsets = [0, 20], sizes = [56, 4], strides = [1, 1]} : vector<56x36xf32> to vector<56x4xf32>
    %22 = arith.maximumf %20, %21 : vector<56x4xf32>
    %23 = vector.extract_strided_slice %1 {offsets = [0, 24], sizes = [56, 4], strides = [1, 1]} : vector<56x36xf32> to vector<56x4xf32>
    %24 = arith.maximumf %22, %23 : vector<56x4xf32>
    %25 = vector.extract_strided_slice %1 {offsets = [0, 28], sizes = [56, 4], strides = [1, 1]} : vector<56x36xf32> to vector<56x4xf32>
    %26 = arith.maximumf %24, %25 : vector<56x4xf32>
    %27 = vector.extract_strided_slice %1 {offsets = [0, 32], sizes = [56, 4], strides = [1, 1]} : vector<56x36xf32> to vector<56x4xf32>
    %28 = arith.maximumf %26, %27 : vector<56x4xf32>
    %c0_10 = arith.constant 0 : index
    %c0_11 = arith.constant 0 : index
    %c0_12 = arith.constant 0 : index
    %29 = vector.load %arg5[%c0_10, %c0_11, %c0_12] : memref<1x56x4xf32, #tpu.memory_space<vmem>>, vector<1x56x4xf32>
    %30 = vector.shape_cast %29 : vector<1x56x4xf32> to vector<56x4xf32>
    %31 = vector.shape_cast %28 : vector<56x4xf32> to vector<1x56x4xf32>
    tpu.vector_store %arg5[%c0_10, %c0_11, %c0_12], %31 {strides = array<i32>} : memref<1x56x4xf32, #tpu.memory_space<vmem>>, vector<1x56x4xf32>,
    return
  }
  func.func @transform_0(%arg0: i32) -> (i32, i32, i32) {
    %c0_i32 = arith.constant 0 : i32
    %c0_i32_0 = arith.constant 0 : i32
    %c0_i32_1 = arith.constant 0 : i32
    return %arg0, %c0_i32, %c0_i32_0 : i32, i32, i32
  }
  func.func @transform_1(%arg0: i32) -> (i32, i32) {
    %c0_i32 = arith.constant 0 : i32
    %c0_i32_0 = arith.constant 0 : i32
    %c0_i32_1 = arith.constant 0 : i32
    return %c0_i32, %c0_i32_0 : i32, i32
  }
  func.func @transform_2(%arg0: i32) -> (i32, i32) {
    %c0_i32 = arith.constant 0 : i32
    %c0_i32_0 = arith.constant 0 : i32
    %c0_i32_1 = arith.constant 0 : i32
    return %c0_i32, %c0_i32_0 : i32, i32
  }
  func.func @transform_3(%arg0: i32) -> (i32, i32, i32) {
    %c0_i32 = arith.constant 0 : i32
    %c0_i32_0 = arith.constant 0 : i32
    %c0_i32_1 = arith.constant 0 : i32
    return %arg0, %c0_i32, %c0_i32_0 : i32, i32, i32
  }
  func.func @transform_4(%arg0: i32) -> (i32, i32, i32) {
    %c0_i32 = arith.constant 0 : i32
    %c0_i32_0 = arith.constant 0 : i32
    %c0_i32_1 = arith.constant 0 : i32
    return %arg0, %c0_i32, %c0_i32_0 : i32, i32, i32
  }
}

</mosaic_0001>

<llo_original>
// kernel: tpu_custom_call.1
$region0: #{tpu_custom_call.1}
  #allocation0 [shape = 'u32[]', space=smem, size = 0x4, offset = 0x4, fixed_abs, tag = 'smem constant byte address 0x4 - core index']
  #allocation1 [shape = 'u32[144,128]{1,0:T(1,128)}', space=vmem, size = 0x12000, scoped, tag = 'internal scratch']
  %s0 = inlined_call_operand.vmem [shape: f32[2,56,36], index: 0, kind: input, shape index: {}]
  %s1 = inlined_call_operand.vmem [shape: f32[36,8], index: 1, kind: input, shape index: {}]
  %s2 = inlined_call_operand.vmem [shape: f32[1,8], index: 2, kind: input, shape index: {}]
  %s3 = inlined_call_operand.vmem [shape: f32[2,56,8], index: 3, kind: output, shape index: {0}]
  %s4 = inlined_call_operand.vmem [shape: f32[2,56,4], index: 4, kind: output, shape index: {1}]
  %5 = xla_tuple %s3, %s4
  %s6 = sld [smem:[#allocation0]]
  $region53: #{tpu_custom_call.1} parent=0
    _
  %s8 = ssub.s32 1, %s6
  %s9 = scalar_select 0, %s8, %s6
  loop: start=0, step=1, limit=4
  $region2: #{tpu_custom_call.1} parent=0 // loop_pre_header
    _
  $region3: #{tpu_custom_call.1} parent=0 // loop_header
    %s11 = sphi 0, %s15
    %p12 = scmp.ge.s32.totalorder %s11, 4
    %s21 = sphi 0, %s23
    %s24 = sphi 0, %s21
    %s25 = sphi 0, %s24
    %s41 = sphi 0, %s25
    %s45 = sphi 0, %s45
    %s47 = sphi 0, %s45
    %s48 = sphi 0, %s47
    %s62 = sphi 0, %s48
    %s66 = sphi 0, %s66
    %s68 = sphi 0, %s66
    %s69 = sphi 0, %s68
    %s83 = sphi 0, %s69
    %s89 = sphi 0, %s91
    %s92 = sphi 0, %s89
    %s93 = sphi 0, %s92
    %s109 = sphi 0, %s93
    %s115 = sphi 0, %s117
    %s118 = sphi 0, %s115
    %s119 = sphi 0, %s118
    %s135 = sphi 0, %s119
  $region4: #{tpu_custom_call.1} parent=0 // loop_header_branch
    %14 = sbr.rel (%p12) target = $region8
  $region5: #{tpu_custom_call.1} parent=0 // loop_body
    %s16 = ssub.s32 %s11, 1
    %s17 = ssub.s32 %s11, 2
    %s18 = sadd.s32 %s11, 1
    %s19 = ssub.s32 %s11, %s18
    %p20 = scmp.eq.s32.totalorder %s19, 0
    %s22 = sadd.s32 %s21, 1
    %s23 = scalar_select %p20, %s21, %s22
    %p26 = pneg %p20
    %p27 = scmp.eq.s32.totalorder %s11, 1
    %p28 = por %p26, %p27
    %p29 = scmp.ne.s32.totalorder %s21, %s24
    %p30 = scmp.eq.s32.totalorder %s11, 0
    %p31 = por %p29, %p30
    %p32 = scmp.ne.s32.totalorder %s21, %s24
    %p33 = scmp.eq.s32.totalorder %s16, 1
    %p34 = por %p32, %p33
    %p35 = scmp.ne.s32.totalorder %s24, %s25
    %p36 = scmp.eq.s32.totalorder %s16, 0
    %p37 = por %p35, %p36
    %p38 = scmp.ne.s32.totalorder %s24, %s25
    %p39 = scmp.eq.s32.totalorder %s17, 1
    %p40 = por %p38, %p39
    %p42 = scmp.ne.s32.totalorder %s25, %s41
    %p43 = scmp.eq.s32.totalorder %s17, 0
    %p44 = por %p42, %p43
    %s46 = sadd.s32 %s45, 1
    %p49 = scmp.eq.s32.totalorder %s11, 1
    %p50 = scmp.ne.s32.totalorder %s45, %s47
    %p51 = scmp.eq.s32.totalorder %s11, 0
    %p52 = por %p50, %p51
    %p53 = scmp.ne.s32.totalorder %s45, %s47
    %p54 = scmp.eq.s32.totalorder %s16, 1
    %p55 = por %p53, %p54
    %p56 = scmp.ne.s32.totalorder %s47, %s48
    %p57 = scmp.eq.s32.totalorder %s16, 0
    %p58 = por %p56, %p57
    %p59 = scmp.ne.s32.totalorder %s47, %s48
    %p60 = scmp.eq.s32.totalorder %s17, 1
    %p61 = por %p59, %p60
    %p63 = scmp.ne.s32.totalorder %s48, %s62
    %p64 = scmp.eq.s32.totalorder %s17, 0
    %p65 = por %p63, %p64
    %s67 = sadd.s32 %s66, 1
    %p70 = scmp.eq.s32.totalorder %s11, 1
    %p71 = scmp.ne.s32.totalorder %s66, %s68
    %p72 = scmp.eq.s32.totalorder %s11, 0
    %p73 = por %p71, %p72
    %p74 = scmp.ne.s32.totalorder %s66, %s68
    %p75 = scmp.eq.s32.totalorder %s16, 1
    %p76 = por %p74, %p75
    %p77 = scmp.ne.s32.totalorder %s68, %s69
    %p78 = scmp.eq.s32.totalorder %s16, 0
    %p79 = por %p77, %p78
    %p80 = scmp.ne.s32.totalorder %s68, %s69
    %p81 = scmp.eq.s32.totalorder %s17, 1
    %p82 = por %p80, %p81
    %p84 = scmp.ne.s32.totalorder %s69, %s83
    %p85 = scmp.eq.s32.totalorder %s17, 0
    %p86 = por %p84, %p85
    %s87 = ssub.s32 %s11, %s18
    %p88 = scmp.eq.s32.totalorder %s87, 0
    %s90 = sadd.s32 %s89, 1
    %s91 = scalar_select %p88, %s89, %s90
    %p94 = pneg %p88
    %p95 = scmp.eq.s32.totalorder %s11, 1
    %p96 = por %p94, %p95
    %p97 = scmp.ne.s32.totalorder %s89, %s92
    %p98 = scmp.eq.s32.totalorder %s11, 0
    %p99 = por %p97, %p98
    %p100 = scmp.ne.s32.totalorder %s89, %s92
    %p101 = scmp.eq.s32.totalorder %s16, 1
    %p102 = por %p100, %p101
    %p103 = scmp.ne.s32.totalorder %s92, %s93
    %p104 = scmp.eq.s32.totalorder %s16, 0
    %p105 = por %p103, %p104
    %p106 = scmp.ne.s32.totalorder %s92, %s93
    %p107 = scmp.eq.s32.totalorder %s17, 1
    %p108 = por %p106, %p107
    %p110 = scmp.ne.s32.totalorder %s93, %s109
    %p111 = scmp.eq.s32.totalorder %s17, 0
    %p112 = por %p110, %p111
    %s113 = ssub.s32 %s11, %s18
    %p114 = scmp.eq.s32.totalorder %s113, 0
    %s116 = sadd.s32 %s115, 1
    %s117 = scalar_select %p114, %s115, %s116
    %p120 = pneg %p114
    %p121 = scmp.eq.s32.totalorder %s11, 1
    %p122 = por %p120, %p121
    %p123 = scmp.ne.s32.totalorder %s115, %s118
    %p124 = scmp.eq.s32.totalorder %s11, 0
    %p125 = por %p123, %p124
    %p126 = scmp.ne.s32.totalorder %s115, %s118
    %p127 = scmp.eq.s32.totalorder %s16, 1
    %p128 = por %p126, %p127
    %p129 = scmp.ne.s32.totalorder %s118, %s119
    %p130 = scmp.eq.s32.totalorder %s16, 0
    %p131 = por %p129, %p130
    %p132 = scmp.ne.s32.totalorder %s118, %s119
    %p133 = scmp.eq.s32.totalorder %s17, 1
    %p134 = por %p132, %p133
    %p136 = scmp.ne.s32.totalorder %s119, %s135
    %p137 = scmp.eq.s32.totalorder %s17, 0
    %p138 = por %p136, %p137
    %p139 = scmp.le.s32.totalorder 1, %s11
    %p140 = scmp.lt.s32.totalorder %s11, 3
    %p141 = pnand %p139, %p140
    %p142 = pneg %p141
    // Predicated region
    $region9: #{tpu_custom_call.1} parent=5 // pred_check
      _
    $region10: #{tpu_custom_call.1} parent=5 // pred_check_branch
      %144 = sbr.rel (%p141) target = $region12
    $region11: #{tpu_custom_call.1} parent=5 // pred_region
      %s145 = ssub.s32 %s11, 1
      // Predicated region
      $region13: #{tpu_custom_call.1} parent=11 // pred_check
        %p146 = pneg %p58
      $region14: #{tpu_custom_call.1} parent=11 // pred_check_branch
        %148 = sbr.rel (%p146) target = $region16
      $region15: #{tpu_custom_call.1} parent=11 // pred_region
        _
      $region16: #{tpu_custom_call.1} parent=11 // pred_fallthru
        _
      // Predicated region
      $region17: #{tpu_custom_call.1} parent=11 // pred_check
        %p149 = pneg %p79
      $region18: #{tpu_custom_call.1} parent=11 // pred_check_branch
        %151 = sbr.rel (%p149) target = $region20
      $region19: #{tpu_custom_call.1} parent=11 // pred_region
        _
      $region20: #{tpu_custom_call.1} parent=11 // pred_fallthru
        _
    $region12: #{tpu_custom_call.1} parent=5 // pred_fallthru
      _
    %p152 = scmp.lt.s32.totalorder %s11, 2
    // Predicated region
    $region21: #{tpu_custom_call.1} parent=5 // pred_check
      %p153 = pneg %p152
    $region22: #{tpu_custom_call.1} parent=5 // pred_check_branch
      %155 = sbr.rel (%p153) target = $region24
    $region23: #{tpu_custom_call.1} parent=5 // pred_region
      // Predicated region
      $region25: #{tpu_custom_call.1} parent=23 // pred_check
        %p156 = pneg %p31
      $region26: #{tpu_custom_call.1} parent=23 // pred_check_branch
        %158 = sbr.rel (%p156) target = $region28
      $region27: #{tpu_custom_call.1} parent=23 // pred_region
        %p159 = scmp.lt.s32.totalorder %s11, 1
        %s160 = scalar_select %p159, %s11, 1
        %s161 = smul.addr %s160, 7
        %s162 = smul.addr %s161, 8
        %s163 = scalar_lea.vmem %s0, %s162
      $region28: #{tpu_custom_call.1} parent=23 // pred_fallthru
        _
    $region24: #{tpu_custom_call.1} parent=5 // pred_fallthru
      _
    %p164 = scmp.le.s32.totalorder 1, %s11
    %p165 = scmp.lt.s32.totalorder %s11, 3
    %p166 = pnand %p164, %p165
    %p167 = pneg %p166
    // Predicated region
    $region29: #{tpu_custom_call.1} parent=5 // pred_check
      _
    $region30: #{tpu_custom_call.1} parent=5 // pred_check_branch
      %169 = sbr.rel (%p166) target = $region32
    $region31: #{tpu_custom_call.1} parent=5 // pred_region
      %s170 = ssub.s32 %s11, 1
      %p171 = scmp.lt.s32.totalorder %s16, 1
      %s172 = scalar_select %p171, %s16, 1
      %s173 = smul.addr %s172, 7
      %s174 = smul.addr %s173, 8
      %s175 = scalar_lea.vmem %s0, %s174
      %p176 = pneg %p37
      %p177 = pneg %p34
      %p178 = pneg %p58
      %p179 = pneg %p55
      %p180 = pneg %p79
      %p181 = pneg %p76
      %p182 = pneg %p105
      %p183 = pneg %p102
      %p184 = scmp.lt.s32.totalorder %s16, 1
      %s185 = scalar_select %p184, %s16, 1
      %s186 = smul.addr %s185, 7
      %s187 = smul.addr %s186, 8
      %s188 = scalar_lea.vmem %s3, %s187
      %p189 = pneg %p131
      %p190 = pneg %p128
      %p191 = scmp.lt.s32.totalorder %s16, 1
      %s192 = scalar_select %p191, %s16, 1
      %s193 = smul.addr %s192, 7
      %s194 = smul.addr %s193, 8
      %s195 = scalar_lea.vmem %s4, %s194
      %p196 = scmp.lt.s32.totalorder %s16, 1
      %s197 = scalar_select %p196, %s16, 1
      %s198 = smul.addr %s197, 7
      %s199 = smul.addr %s198, 8
      %s200 = scalar_lea.vmem %s0, %s199
      %p201 = scmp.lt.s32.totalorder %s16, 1
      %s202 = scalar_select %p201, %s16, 1
      %s203 = smul.addr %s202, 7
      %s204 = smul.addr %s203, 8
      %s205 = scalar_lea.vmem %s3, %s204
      %p206 = scmp.lt.s32.totalorder %s16, 1
      %s207 = scalar_select %p206, %s16, 1
      %s208 = smul.addr %s207, 7
      %s209 = smul.addr %s208, 8
      %s210 = scalar_lea.vmem %s4, %s209
      %v211 = vld [vmem:[%s200] sm:$0xff]
      %v212 = vld [vmem:[%s200 + $0x8] sm:$0xff]
      %v213 = vld [vmem:[%s200 + $0x10] sm:$0xff]
      %v214 = vld [vmem:[%s200 + $0x18] sm:$0xff]
      %v215 = vld [vmem:[%s200 + $0x20] sm:$0xff]
      %v216 = vld [vmem:[%s200 + $0x28] sm:$0xff]
      %v217 = vld [vmem:[%s200 + $0x30] sm:$0xff]
      %v218 = vld [vmem:[%s1] sm:$0xff]
      %v219 = vld [vmem:[%s1 + $0x8] sm:$0xff]
      %v220 = vld [vmem:[%s1 + $0x10] sm:$0xff]
      %v221 = vld [vmem:[%s1 + $0x18] sm:$0xff]
      %v222 = vld [vmem:[%s1 + $0x20] sm:$0xf]
      %v223 = vld [vmem:[%s2] sm:$0x1]
      %v225 = vlaneseq
      %v226 = vshrl.u32 %v225, 7
      %v227 = vsub.s32 0, %v226
      %v228 = vrot.slane %v223, %v227
      %vm230 = vcmask 293888
      %v232 = vsel %vm230, %v211, 0
      %v235 = vsel %vm230, %v212, 0
      %v238 = vsel %vm230, %v213, 0
      %v241 = vsel %vm230, %v214, 0
      %v244 = vsel %vm230, %v215, 0
      %v247 = vsel %vm230, %v216, 0
      %v250 = vsel %vm230, %v217, 0
      %vm252 = vcmask 1043456
      %v254 = vsel %vm252, %v222, 0
      %256 = vmatprep.subr.mxu0 0.0
      %257 = vmatpush1.msra.mxu0 0.0
      %258 = vmatprep.subr.mxu0 0.0
      %259 = vmatpush1.msra.mxu0 0.0
      %260 = vmatprep.subr.mxu0 0.0
      %261 = vmatpush1.msra.mxu0 0.0
      %262 = vmatprep.subr.mxu0 0.0
      %263 = vmatpush1.msra.mxu0 0.0
      %264 = vmatprep.subr.mxu0 0.0
      %265 = vmatpush1.msra.mxu0 0.0
      %266 = vmatprep.subr.mxu0 0.0
      %267 = vmatpush1.msra.mxu0 0.0
      %268 = vmatprep.subr.mxu0 0.0
      %269 = vmatpush1.msra.mxu0 0.0
      %270 = vmatprep.subr.mxu0 0.0
      %271 = vmatpush1.msra.mxu0 0.0
      %272 = vmatprep.subr.mxu0 0.0
      %273 = vmatpush1.msra.mxu0 0.0
      %274 = vmatprep.subr.mxu0 0.0
      %275 = vmatpush1.msra.mxu0 0.0
      %276 = vmatprep.subr.mxu0 0.0
      %277 = vmatpush1.msra.mxu0 0.0
      %278 = vmatprep.subr.mxu0 0.0
      %279 = vmatpush1.msra.mxu0 %v254
      %280 = vmatprep.subr.mxu0 0.0
      %281 = vmatpush1.msra.mxu0 %v221
      %282 = vmatprep.subr.mxu0 0.0
      %283 = vmatpush1.msra.mxu0 %v220
      %284 = vmatprep.subr.mxu0 0.0
      %285 = vmatpush1.msra.mxu0 %v219
      %286 = vmatprep.subr.mxu0 0.0
      %287 = vmatpush1.msra.mxu0 %v218
      %288 = vmatprep.subr.mxu0 0.0
      %289 = vmatpush2.msra.mxu0 0.0
      %290 = vmatprep.subr.mxu0 0.0
      %291 = vmatpush2.msra.mxu0 0.0
      %292 = vmatprep.subr.mxu0 0.0
      %293 = vmatpush2.msra.mxu0 0.0
      %294 = vmatprep.subr.mxu0 0.0
      %295 = vmatpush2.msra.mxu0 0.0
      %296 = vmatprep.subr.mxu0 0.0
      %297 = vmatpush2.msra.mxu0 0.0
      %298 = vmatprep.subr.mxu0 0.0
      %299 = vmatpush2.msra.mxu0 0.0
      %300 = vmatprep.subr.mxu0 0.0
      %301 = vmatpush2.msra.mxu0 0.0
      %302 = vmatprep.subr.mxu0 0.0
      %303 = vmatpush2.msra.mxu0 0.0
      %304 = vmatprep.subr.mxu0 0.0
      %305 = vmatpush2.msra.mxu0 0.0
      %306 = vmatprep.subr.mxu0 0.0
      %307 = vmatpush2.msra.mxu0 0.0
      %308 = vmatprep.subr.mxu0 0.0
      %309 = vmatpush2.msra.mxu0 0.0
      %310 = vmatprep.subr.mxu0 0.0
      %311 = vmatpush2.msra.mxu0 0.0
      %312 = vmatprep.subr.mxu0 0.0
      %313 = vmatpush2.msra.mxu0 0.0
      %314 = vmatprep.subr.mxu0 0.0
      %315 = vmatpush2.msra.mxu0 0.0
      %316 = vmatprep.subr.mxu0 0.0
      %317 = vmatpush2.msra.mxu0 0.0
      %318 = vmatprep.subr.mxu0 0.0
      %319 = vmatpush2.msra.mxu0 0.0
      %320 = vmatprep.mubr.f32.mxu0 0.0
      %321 = vmatmul.mubr.f32.gmra.mxu0 %v232
      %v322 = vpop.f32.mrf.mxu0
      %v323 = vadd.f32 %v228, %v322
      %v324 = vpop.f32.mrf.mxu0
      %325 = vmatprep.mubr.f32.mxu0 0.0
      %326 = vmatmul.mubr.f32.gmra.mxu0 %v235
      %v327 = vpop.f32.mrf.mxu0
      %v328 = vadd.f32 %v228, %v327
      %v329 = vpop.f32.mrf.mxu0
      %330 = vmatprep.mubr.f32.mxu0 0.0
      %331 = vmatmul.mubr.f32.gmra.mxu0 %v238
      %v332 = vpop.f32.mrf.mxu0
      %v333 = vadd.f32 %v228, %v332
      %v334 = vpop.f32.mrf.mxu0
      %335 = vmatprep.mubr.f32.mxu0 0.0
      %336 = vmatmul.mubr.f32.gmra.mxu0 %v241
      %v337 = vpop.f32.mrf.mxu0
      %v338 = vadd.f32 %v228, %v337
      %v339 = vpop.f32.mrf.mxu0
      %340 = vmatprep.mubr.f32.mxu0 0.0
      %341 = vmatmul.mubr.f32.gmra.mxu0 %v244
      %v342 = vpop.f32.mrf.mxu0
      %v343 = vadd.f32 %v228, %v342
      %v344 = vpop.f32.mrf.mxu0
      %345 = vmatprep.mubr.f32.mxu0 0.0
      %346 = vmatmul.mubr.f32.gmra.mxu0 %v247
      %v347 = vpop.f32.mrf.mxu0
      %v348 = vadd.f32 %v228, %v347
      %v349 = vpop.f32.mrf.mxu0
      %350 = vmatprep.mubr.f32.mxu0 0.0
      %351 = vmatmul.mubr.f32.gmra.mxu0 %v250
      %v352 = vpop.f32.mrf.mxu0
      %v353 = vadd.f32 %v228, %v352
      %v354 = vpop.f32.mrf.mxu0
      %355 = vdwg.mxu0
      %v356 = vmax.f32 %v323, 0.0
      %v357 = vmax.f32 %v328, 0.0
      %v358 = vmax.f32 %v333, 0.0
      %v359 = vmax.f32 %v338, 0.0
      %v360 = vmax.f32 %v343, 0.0
      %v361 = vmax.f32 %v348, 0.0
      %v362 = vmax.f32 %v353, 0.0
      %vm363 = vcmask 64512
      %364 = vst.msk [vmem:[%s205] sm:$0xff] %vm363, %v356
      %365 = vst.msk [vmem:[%s205 + $0x8] sm:$0xff] %vm363, %v357
      %366 = vst.msk [vmem:[%s205 + $0x10] sm:$0xff] %vm363, %v358
      %367 = vst.msk [vmem:[%s205 + $0x18] sm:$0xff] %vm363, %v359
      %368 = vst.msk [vmem:[%s205 + $0x20] sm:$0xff] %vm363, %v360
      %369 = vst.msk [vmem:[%s205 + $0x28] sm:$0xff] %vm363, %v361
      %370 = vst.msk [vmem:[%s205 + $0x30] sm:$0xff] %vm363, %v362
      %371 = vrot.lane.b32.xlu0 %v211, 124
      %v372 = vpop.permute.xlu0 %371
      %373 = vrot.lane.b32.xlu0 %v212, 124
      %v374 = vpop.permute.xlu0 %373
      %375 = vrot.lane.b32.xlu0 %v213, 124
      %v376 = vpop.permute.xlu0 %375
      %377 = vrot.lane.b32.xlu0 %v214, 124
      %v378 = vpop.permute.xlu0 %377
      %379 = vrot.lane.b32.xlu0 %v215, 124
      %v380 = vpop.permute.xlu0 %379
      %381 = vrot.lane.b32.xlu0 %v216, 124
      %v382 = vpop.permute.xlu0 %381
      %383 = vrot.lane.b32.xlu0 %v217, 124
      %v384 = vpop.permute.xlu0 %383
      %v392 = vmax.f32 %v211, %v372
      %v393 = vmax.f32 %v212, %v374
      %v394 = vmax.f32 %v213, %v376
      %v395 = vmax.f32 %v214, %v378
      %v396 = vmax.f32 %v215, %v380
      %v397 = vmax.f32 %v216, %v382
      %v398 = vmax.f32 %v217, %v384
      %399 = vrot.lane.b32.xlu0 %v211, 120
      %v400 = vpop.permute.xlu0 %399
      %401 = vrot.lane.b32.xlu0 %v212, 120
      %v402 = vpop.permute.xlu0 %401
      %403 = vrot.lane.b32.xlu0 %v213, 120
      %v404 = vpop.permute.xlu0 %403
      %405 = vrot.lane.b32.xlu0 %v214, 120
      %v406 = vpop.permute.xlu0 %405
      %407 = vrot.lane.b32.xlu0 %v215, 120
      %v408 = vpop.permute.xlu0 %407
      %409 = vrot.lane.b32.xlu0 %v216, 120
      %v410 = vpop.permute.xlu0 %409
      %411 = vrot.lane.b32.xlu0 %v217, 120
      %v412 = vpop.permute.xlu0 %411
      %v420 = vmax.f32 %v392, %v400
      %v421 = vmax.f32 %v393, %v402
      %v422 = vmax.f32 %v394, %v404
      %v423 = vmax.f32 %v395, %v406
      %v424 = vmax.f32 %v396, %v408
      %v425 = vmax.f32 %v397, %v410
      %v426 = vmax.f32 %v398, %v412
      %427 = vrot.lane.b32.xlu0 %v211, 116
      %v428 = vpop.permute.xlu0 %427
      %429 = vrot.lane.b32.xlu0 %v212, 116
      %v430 = vpop.permute.xlu0 %429
      %431 = vrot.lane.b32.xlu0 %v213, 116
      %v432 = vpop.permute.xlu0 %431
      %433 = vrot.lane.b32.xlu0 %v214, 116
      %v434 = vpop.permute.xlu0 %433
      %435 = vrot.lane.b32.xlu0 %v215, 116
      %v436 = vpop.permute.xlu0 %435
      %437 = vrot.lane.b32.xlu0 %v216, 116
      %v438 = vpop.permute.xlu0 %437
      %439 = vrot.lane.b32.xlu0 %v217, 116
      %v440 = vpop.permute.xlu0 %439
      %v448 = vmax.f32 %v420, %v428
      %v449 = vmax.f32 %v421, %v430
      %v450 = vmax.f32 %v422, %v432
      %v451 = vmax.f32 %v423, %v434
      %v452 = vmax.f32 %v424, %v436
      %v453 = vmax.f32 %v425, %v438
      %v454 = vmax.f32 %v426, %v440
      %455 = vrot.lane.b32.xlu0 %v211, 112
      %v456 = vpop.permute.xlu0 %455
      %457 = vrot.lane.b32.xlu0 %v212, 112
      %v458 = vpop.permute.xlu0 %457
      %459 = vrot.lane.b32.xlu0 %v213, 112
      %v460 = vpop.permute.xlu0 %459
      %461 = vrot.lane.b32.xlu0 %v214, 112
      %v462 = vpop.permute.xlu0 %461
      %463 = vrot.lane.b32.xlu0 %v215, 112
      %v464 = vpop.permute.xlu0 %463
      %465 = vrot.lane.b32.xlu0 %v216, 112
      %v466 = vpop.permute.xlu0 %465
      %467 = vrot.lane.b32.xlu0 %v217, 112
      %v468 = vpop.permute.xlu0 %467
      %v476 = vmax.f32 %v448, %v456
      %v477 = vmax.f32 %v449, %v458
      %v478 = vmax.f32 %v450, %v460
      %v479 = vmax.f32 %v451, %v462
      %v480 = vmax.f32 %v452, %v464
      %v481 = vmax.f32 %v453, %v466
      %v482 = vmax.f32 %v454, %v468
      %483 = vrot.lane.b32.xlu0 %v211, 108
      %v484 = vpop.permute.xlu0 %483
      %485 = vrot.lane.b32.xlu0 %v212, 108
      %v486 = vpop.permute.xlu0 %485
      %487 = vrot.lane.b32.xlu0 %v213, 108
      %v488 = vpop.permute.xlu0 %487
      %489 = vrot.lane.b32.xlu0 %v214, 108
      %v490 = vpop.permute.xlu0 %489
      %491 = vrot.lane.b32.xlu0 %v215, 108
      %v492 = vpop.permute.xlu0 %491
      %493 = vrot.lane.b32.xlu0 %v216, 108
      %v494 = vpop.permute.xlu0 %493
      %495 = vrot.lane.b32.xlu0 %v217, 108
      %v496 = vpop.permute.xlu0 %495
      %v504 = vmax.f32 %v476, %v484
      %v505 = vmax.f32 %v477, %v486
      %v506 = vmax.f32 %v478, %v488
      %v507 = vmax.f32 %v479, %v490
      %v508 = vmax.f32 %v480, %v492
      %v509 = vmax.f32 %v481, %v494
      %v510 = vmax.f32 %v482, %v496
      %511 = vrot.lane.b32.xlu0 %v211, 104
      %v512 = vpop.permute.xlu0 %511
      %513 = vrot.lane.b32.xlu0 %v212, 104
      %v514 = vpop.permute.xlu0 %513
      %515 = vrot.lane.b32.xlu0 %v213, 104
      %v516 = vpop.permute.xlu0 %515
      %517 = vrot.lane.b32.xlu0 %v214, 104
      %v518 = vpop.permute.xlu0 %517
      %519 = vrot.lane.b32.xlu0 %v215, 104
      %v520 = vpop.permute.xlu0 %519
      %521 = vrot.lane.b32.xlu0 %v216, 104
      %v522 = vpop.permute.xlu0 %521
      %523 = vrot.lane.b32.xlu0 %v217, 104
      %v524 = vpop.permute.xlu0 %523
      %v532 = vmax.f32 %v504, %v512
      %v533 = vmax.f32 %v505, %v514
      %v534 = vmax.f32 %v506, %v516
      %v535 = vmax.f32 %v507, %v518
      %v536 = vmax.f32 %v508, %v520
      %v537 = vmax.f32 %v509, %v522
      %v538 = vmax.f32 %v510, %v524
      %539 = vrot.lane.b32.xlu0 %v211, 100
      %v540 = vpop.permute.xlu0 %539
      %541 = vrot.lane.b32.xlu0 %v212, 100
      %v542 = vpop.permute.xlu0 %541
      %543 = vrot.lane.b32.xlu0 %v213, 100
      %v544 = vpop.permute.xlu0 %543
      %545 = vrot.lane.b32.xlu0 %v214, 100
      %v546 = vpop.permute.xlu0 %545
      %547 = vrot.lane.b32.xlu0 %v215, 100
      %v548 = vpop.permute.xlu0 %547
      %549 = vrot.lane.b32.xlu0 %v216, 100
      %v550 = vpop.permute.xlu0 %549
      %551 = vrot.lane.b32.xlu0 %v217, 100
      %v552 = vpop.permute.xlu0 %551
      %v560 = vmax.f32 %v532, %v540
      %v561 = vmax.f32 %v533, %v542
      %v562 = vmax.f32 %v534, %v544
      %v563 = vmax.f32 %v535, %v546
      %v564 = vmax.f32 %v536, %v548
      %v565 = vmax.f32 %v537, %v550
      %v566 = vmax.f32 %v538, %v552
      %567 = vrot.lane.b32.xlu0 %v211, 96
      %v568 = vpop.permute.xlu0 %567
      %569 = vrot.lane.b32.xlu0 %v212, 96
      %v570 = vpop.permute.xlu0 %569
      %571 = vrot.lane.b32.xlu0 %v213, 96
      %v572 = vpop.permute.xlu0 %571
      %573 = vrot.lane.b32.xlu0 %v214, 96
      %v574 = vpop.permute.xlu0 %573
      %575 = vrot.lane.b32.xlu0 %v215, 96
      %v576 = vpop.permute.xlu0 %575
      %577 = vrot.lane.b32.xlu0 %v216, 96
      %v578 = vpop.permute.xlu0 %577
      %579 = vrot.lane.b32.xlu0 %v217, 96
      %v580 = vpop.permute.xlu0 %579
      %v588 = vmax.f32 %v560, %v568
      %v589 = vmax.f32 %v561, %v570
      %v590 = vmax.f32 %v562, %v572
      %v591 = vmax.f32 %v563, %v574
      %v592 = vmax.f32 %v564, %v576
      %v593 = vmax.f32 %v565, %v578
      %v594 = vmax.f32 %v566, %v580
      %vm595 = vcmask 31744
      %596 = vst.msk [vmem:[%s210] sm:$0xff] %vm595, %v588
      %597 = vst.msk [vmem:[%s210 + $0x8] sm:$0xff] %vm595, %v589
      %598 = vst.msk [vmem:[%s210 + $0x10] sm:$0xff] %vm595, %v590
      %599 = vst.msk [vmem:[%s210 + $0x18] sm:$0xff] %vm595, %v591
      %600 = vst.msk [vmem:[%s210 + $0x20] sm:$0xff] %vm595, %v592
      %601 = vst.msk [vmem:[%s210 + $0x28] sm:$0xff] %vm595, %v593
      %602 = vst.msk [vmem:[%s210 + $0x30] sm:$0xff] %vm595, %v594
      %p603 = scmp.lt.s32.totalorder %s16, 1
      %s604 = scalar_select %p603, %s16, 1
      %s605 = smul.addr %s604, 7
      %s606 = smul.addr %s605, 8
      %s607 = scalar_lea.vmem %s3, %s606
      %p608 = scmp.lt.s32.totalorder %s16, 1
      %s609 = scalar_select %p608, %s16, 1
      %s610 = smul.addr %s609, 7
      %s611 = smul.addr %s610, 8
      %s612 = scalar_lea.vmem %s4, %s611
      // Predicated region
      $region33: #{tpu_custom_call.1} parent=31 // pred_check
        %p613 = pneg %p102
      $region34: #{tpu_custom_call.1} parent=31 // pred_check_branch
        %615 = sbr.rel (%p613) target = $region36
      $region35: #{tpu_custom_call.1} parent=31 // pred_region
        _
      $region36: #{tpu_custom_call.1} parent=31 // pred_fallthru
        _
      // Predicated region
      $region37: #{tpu_custom_call.1} parent=31 // pred_check
        %p616 = pneg %p128
      $region38: #{tpu_custom_call.1} parent=31 // pred_check_branch
        %618 = sbr.rel (%p616) target = $region40
      $region39: #{tpu_custom_call.1} parent=31 // pred_region
        _
      $region40: #{tpu_custom_call.1} parent=31 // pred_fallthru
        _
    $region32: #{tpu_custom_call.1} parent=5 // pred_fallthru
      _
    %p619 = scmp.le.s32.totalorder 2, %s11
    // Predicated region
    $region41: #{tpu_custom_call.1} parent=5 // pred_check
      %p620 = pneg %p619
    $region42: #{tpu_custom_call.1} parent=5 // pred_check_branch
      %622 = sbr.rel (%p620) target = $region44
    $region43: #{tpu_custom_call.1} parent=5 // pred_region
      %s623 = ssub.s32 %s11, 2
      // Predicated region
      $region45: #{tpu_custom_call.1} parent=43 // pred_check
        %p624 = pneg %p108
      $region46: #{tpu_custom_call.1} parent=43 // pred_check_branch
        %626 = sbr.rel (%p624) target = $region48
      $region47: #{tpu_custom_call.1} parent=43 // pred_region
        %p627 = scmp.lt.s32.totalorder %s17, 1
        %s628 = scalar_select %p627, %s17, 1
        %s629 = smul.addr %s628, 7
        %s630 = smul.addr %s629, 8
        %s631 = scalar_lea.vmem %s3, %s630
      $region48: #{tpu_custom_call.1} parent=43 // pred_fallthru
        _
      // Predicated region
      $region49: #{tpu_custom_call.1} parent=43 // pred_check
        %p632 = pneg %p134
      $region50: #{tpu_custom_call.1} parent=43 // pred_check_branch
        %634 = sbr.rel (%p632) target = $region52
      $region51: #{tpu_custom_call.1} parent=43 // pred_region
        %p635 = scmp.lt.s32.totalorder %s17, 1
        %s636 = scalar_select %p635, %s17, 1
        %s637 = smul.addr %s636, 7
        %s638 = smul.addr %s637, 8
        %s639 = scalar_lea.vmem %s4, %s638
      $region52: #{tpu_custom_call.1} parent=43 // pred_fallthru
        _
    $region44: #{tpu_custom_call.1} parent=5 // pred_fallthru
      _
  $region6: #{tpu_custom_call.1} parent=0 // loop_footer
    %s15 = sadd.s32 1, %s11
  $region7: #{tpu_custom_call.1} parent=0 // loop_footer_branch
    %10 = sbr.rel target = $region3
  $region8: #{tpu_custom_call.1} parent=0 // loop_exit
    _

</llo_original>
